<compile_context>
chip_gen: v5e
topology: v5e:2x2
jax: 0.10.0
libtpu: 0.0.40
codegen_flags: <defaults>
</compile_context>

<pallas_src>
import functools

import jax
import jax.numpy as jnp
from jax.experimental import pallas as pl
from jax.experimental.pallas import tpu as pltpu


def _round_up(x: int, m: int) -> int:
    return (x + m - 1) // m * m


def _time_emb_kernel(x_ref, w1_ref, b1_ref, w2_ref, b2_ref, o_ref):
    # x_ref : (bm, D)   input tile (batch rows on sublanes, D on lanes)
    # w1_ref: (D, H)    linear_1 weight, (in, out) layout, H = 4*D
    # b1_ref: (1, H)    f32
    # w2_ref: (H, H)    linear_2 weight, (in, out) layout
    # b2_ref: (1, H)    f32
    # o_ref : (bm, H)   lane-dense output tile
    x = x_ref[...].astype(w1_ref.dtype)

    # linear_1 + bias, f32 accumulation on the MXU
    h = jnp.dot(x, w1_ref[...], preferred_element_type=jnp.float32)
    h = h + b1_ref[...].astype(jnp.float32)

    # SiLU: h * sigmoid(h) in f32 (sigmoid runs on the EUP slot; v5e has no bf16 EUP)
    h = h * jax.nn.sigmoid(h)

    # linear_2 + bias, f32 accumulation
    out = jnp.dot(h.astype(w2_ref.dtype), w2_ref[...],
                  preferred_element_type=jnp.float32)
    out = out + b2_ref[...].astype(jnp.float32)

    o_ref[...] = out.astype(o_ref.dtype)


def prepare_time_embedding_params(w1, b1, w2, b2, param_dtype=None):
    """One-time parameter preparation (do this at load time, NOT per forward).

    w1: (4D, D) PyTorch nn.Linear layout (out_features, in_features)
    b1: (4D,)
    w2: (4D, 4D)
    b2: (4D,)
    param_dtype: optionally cast weights (e.g. jnp.bfloat16) for large-B use;
                 biases stay f32 so the bias+SiLU math is exact.
    Returns (w1t, b1r, w2t, b2r) ready for time_embeddings_forward.
    """
    H, D = w1.shape
    assert w2.shape == (H, H)
    w1t = jnp.transpose(w1)            # (D, H)  -> kernel computes x @ W
    w2t = jnp.transpose(w2)            # (H, H)
    if param_dtype is not None:
        w1t = w1t.astype(param_dtype)
        w2t = w2t.astype(param_dtype)
    b1r = b1.reshape(1, H).astype(jnp.float32)
    b2r = b2.reshape(1, H).astype(jnp.float32)
    return w1t, b1r, w2t, b2r


@functools.partial(jax.jit, static_argnames=("block_m",))
def time_embeddings_forward(x, w1t, b1r, w2t, b2r, *, block_m: int = 1024):
    """Equivalent of TimeEmbeddings.forward, using prepared params.

    x   : (B, D)
    w1t : (D, H)   (in, out) layout, H = 4*D
    b1r : (1, H)   f32
    w2t : (H, H)
    b2r : (1, H)   f32
    returns (B, H) in x.dtype
    """
    B, D = x.shape
    H = w1t.shape[1]
    assert w1t.shape == (D, H)
    assert w2t.shape == (H, H)

    # Tile selection:
    #  * Small batch (the common diffusion case): single exact-shape step,
    #    no pad / no slice.
    #  * Large batch: biggest tile that fits block_m, but capped at ceil(B/2)
    #    rows so the grid has >= 2 parallel steps (v7x has 2 TensorCores).
    if B <= min(block_m, 256):
        bm, b_pad = B, B
    else:
        bm = min(block_m, _round_up(pl.cdiv(B, 2), 8))
        b_pad = _round_up(B, bm)

    x_in = x
    if b_pad != B:
        x_in = jnp.pad(x, ((0, b_pad - B), (0, 0)))
    grid = (b_pad // bm,)

    itemsize = lambda a: a.dtype.itemsize
    cost = pl.CostEstimate(
        flops=2 * b_pad * (D * H + H * H),
        transcendentals=b_pad * H,                       # sigmoid
        bytes_accessed=(b_pad * D * itemsize(x_in)
                        + D * H * itemsize(w1t) + H * itemsize(b1r)
                        + H * H * itemsize(w2t) + H * itemsize(b2r)
                        + b_pad * H * itemsize(x_in)),
    )

    out = pl.pallas_call(
        _time_emb_kernel,
        out_shape=jax.ShapeDtypeStruct((b_pad, H), x.dtype),
        grid_spec=pltpu.PrefetchScalarGridSpec(
            num_scalar_prefetch=0,
            grid=grid,
            in_specs=[
                pl.BlockSpec((bm, D), lambda i: (i, 0)),   # x tile (per step)
                pl.BlockSpec((D, H), lambda i: (0, 0)),    # w1 (resident)
                pl.BlockSpec((1, H), lambda i: (0, 0)),    # b1
                pl.BlockSpec((H, H), lambda i: (0, 0)),    # w2 (resident)
                pl.BlockSpec((1, H), lambda i: (0, 0)),    # b2
            ],
            out_specs=pl.BlockSpec((bm, H), lambda i: (i, 0)),
        ),
        compiler_params=pltpu.CompilerParams(
            dimension_semantics=("parallel",)),
        cost_estimate=cost,
    )(x_in, w1t, b1r, w2t, b2r)

    if b_pad != B:
        out = out[:B]
    return out


def _reference(x, w1, b1, w2, b2):
    h = x @ w1.T + b1
    h = h * jax.nn.sigmoid(h)
    return h @ w2.T + b2


if __name__ == "__main__":
    key = jax.random.PRNGKey(0)
    kx, kw1, kb1, kw2, kb2 = jax.random.split(key, 5)

    B = 2                      # batch of timesteps
    D = 32                     # time_embedding_dim
    H = 4 * D                  # hidden / output width = 128 (lane-dense)

    x = jax.random.normal(kx, (B, D), jnp.float32)
    w1 = jax.random.normal(kw1, (H, D), jnp.float32) * 0.1
    b1 = jax.random.normal(kb1, (H,), jnp.float32) * 0.1
    w2 = jax.random.normal(kw2, (H, H), jnp.float32) * 0.1
    b2 = jax.random.normal(kb2, (H,), jnp.float32) * 0.1

    # One-time parameter prep (hoisted out of the forward path).
    params = prepare_time_embedding_params(w1, b1, w2, b2)

    out = jax.block_until_ready(time_embeddings_forward(x, *params))
    ref = jax.block_until_ready(_reference(x, w1, b1, w2, b2))
    assert out.shape == (B, H)
    assert jnp.allclose(out, ref, atol=1e-4, rtol=1e-4)

    # Also exercise the multi-step (large-batch, padded) path for coverage.
    B2 = 600
    x2 = jax.random.normal(kx, (B2, D), jnp.float32)
    out2 = jax.block_until_ready(time_embeddings_forward(x2, *params))
    ref2 = jax.block_until_ready(_reference(x2, w1, b1, w2, b2))
    assert out2.shape == (B2, H)
    assert jnp.allclose(out2, ref2, atol=1e-4, rtol=1e-4)

    print("KERNEL_OK")
</pallas_src>

<mosaic_0001>
module attributes {stable_mosaic.version = 11 : i64} {
  func.func @_time_emb_kernel(%arg0: i32, %arg1: memref<2x32xf32, #tpu.memory_space<vmem>>, %arg2: memref<32x128xf32, #tpu.memory_space<vmem>>, %arg3: memref<1x128xf32, #tpu.memory_space<vmem>>, %arg4: memref<128x128xf32, #tpu.memory_space<vmem>>, %arg5: memref<1x128xf32, #tpu.memory_space<vmem>>, %arg6: memref<2x128xf32, #tpu.memory_space<vmem>>) attributes {dimension_semantics = [#tpu.dimension_semantics<parallel>], iteration_bounds = array<i64: 1>, scalar_prefetch = 0 : i64, scratch_operands = 0 : i64, tpu.core_type = #tpu.core_type<tc>, window_params = [{transform_indices = @transform_0, window_bounds = array<i64: 2, 32>}, {pipeline_mode = #tpu.pipeline_mode<synchronous>, transform_indices = @transform_1, window_bounds = array<i64: 32, 128>}, {pipeline_mode = #tpu.pipeline_mode<synchronous>, transform_indices = @transform_2, window_bounds = array<i64: 1, 128>}, {pipeline_mode = #tpu.pipeline_mode<synchronous>, transform_indices = @transform_3, window_bounds = array<i64: 128, 128>}, {pipeline_mode = #tpu.pipeline_mode<synchronous>, transform_indices = @transform_4, window_bounds = array<i64: 1, 128>}, {transform_indices = @transform_5, window_bounds = array<i64: 2, 128>}]} {
    %c0 = arith.constant 0 : index
    %c0_0 = arith.constant 0 : index
    %0 = vector.load %arg1[%c0, %c0_0] : memref<2x32xf32, #tpu.memory_space<vmem>>, vector<2x32xf32>
    %c0_1 = arith.constant 0 : index
    %c0_2 = arith.constant 0 : index
    %1 = vector.load %arg2[%c0_1, %c0_2] : memref<32x128xf32, #tpu.memory_space<vmem>>, vector<32x128xf32>
    %cst = arith.constant dense<0.000000e+00> : vector<2x128xf32>
    %2 = tpu.matmul %0, %1, %cst {dimension_numbers = #tpu.dot_dimension_numbers<[1], [0], [0], [1], [0, 0, 1, 1], [], []>} : vector<2x32xf32>, vector<32x128xf32>, vector<2x128xf32> -> vector<2x128xf32>
    %c0_3 = arith.constant 0 : index
    %c0_4 = arith.constant 0 : index
    %3 = vector.load %arg3[%c0_3, %c0_4] : memref<1x128xf32, #tpu.memory_space<vmem>>, vector<1x128xf32>
    %4 = vector.broadcast %3 : vector<1x128xf32> to vector<2x128xf32>
    %5 = arith.addf %2, %4 : vector<2x128xf32>
    %6 = arith.negf %5 : vector<2x128xf32>
    %7 = math.exp %6 : vector<2x128xf32>
    %cst_5 = arith.constant 1.000000e+00 : f32
    %8 = vector.broadcast %cst_5 : f32 to vector<2x128xf32>
    %9 = arith.addf %8, %7 : vector<2x128xf32>
    %10 = arith.divf %8, %9 : vector<2x128xf32>
    %11 = arith.mulf %5, %10 : vector<2x128xf32>
    %c0_6 = arith.constant 0 : index
    %c0_7 = arith.constant 0 : index
    %12 = vector.load %arg4[%c0_6, %c0_7] : memref<128x128xf32, #tpu.memory_space<vmem>>, vector<128x128xf32>
    %cst_8 = arith.constant dense<0.000000e+00> : vector<2x128xf32>
    %13 = tpu.matmul %11, %12, %cst_8 {dimension_numbers = #tpu.dot_dimension_numbers<[1], [0], [0], [1], [0, 0, 1, 1], [], []>} : vector<2x128xf32>, vector<128x128xf32>, vector<2x128xf32> -> vector<2x128xf32>
    %c0_9 = arith.constant 0 : index
    %c0_10 = arith.constant 0 : index
    %14 = vector.load %arg5[%c0_9, %c0_10] : memref<1x128xf32, #tpu.memory_space<vmem>>, vector<1x128xf32>
    %15 = vector.broadcast %14 : vector<1x128xf32> to vector<2x128xf32>
    %16 = arith.addf %13, %15 : vector<2x128xf32>
    %c0_11 = arith.constant 0 : index
    %c0_12 = arith.constant 0 : index
    %17 = vector.load %arg6[%c0_11, %c0_12] : memref<2x128xf32, #tpu.memory_space<vmem>>, vector<2x128xf32>
    tpu.vector_store %arg6[%c0_11, %c0_12], %16 {strides = array<i32>} : memref<2x128xf32, #tpu.memory_space<vmem>>, vector<2x128xf32>,
    return
  }
  func.func @transform_0(%arg0: i32) -> (i32, i32) {
    %c0_i32 = arith.constant 0 : i32
    %c0_i32_0 = arith.constant 0 : i32
    return %arg0, %c0_i32 : i32, i32
  }
  func.func @transform_1(%arg0: i32) -> (i32, i32) {
    %c0_i32 = arith.constant 0 : i32
    %c0_i32_0 = arith.constant 0 : i32
    %c0_i32_1 = arith.constant 0 : i32
    return %c0_i32, %c0_i32_0 : i32, i32
  }
  func.func @transform_2(%arg0: i32) -> (i32, i32) {
    %c0_i32 = arith.constant 0 : i32
    %c0_i32_0 = arith.constant 0 : i32
    %c0_i32_1 = arith.constant 0 : i32
    return %c0_i32, %c0_i32_0 : i32, i32
  }
  func.func @transform_3(%arg0: i32) -> (i32, i32) {
    %c0_i32 = arith.constant 0 : i32
    %c0_i32_0 = arith.constant 0 : i32
    %c0_i32_1 = arith.constant 0 : i32
    return %c0_i32, %c0_i32_0 : i32, i32
  }
  func.func @transform_4(%arg0: i32) -> (i32, i32) {
    %c0_i32 = arith.constant 0 : i32
    %c0_i32_0 = arith.constant 0 : i32
    %c0_i32_1 = arith.constant 0 : i32
    return %c0_i32, %c0_i32_0 : i32, i32
  }
  func.func @transform_5(%arg0: i32) -> (i32, i32) {
    %c0_i32 = arith.constant 0 : i32
    %c0_i32_0 = arith.constant 0 : i32
    return %arg0, %c0_i32 : i32, i32
  }
}

</mosaic_0001>

<llo_original>
// kernel: time_embeddings_forward.1
$region0: #{time_embeddings_forward.1}
  #allocation0 [shape = 'u32[]', space=smem, size = 0x4, offset = 0x4, fixed_abs, tag = 'smem constant byte address 0x4 - core index']
  #allocation1 [shape = 'u32[72,128]{1,0:T(1,128)}', space=vmem, size = 0x9000, scoped, tag = 'internal scratch']
  %s0 = inlined_call_operand.hbm [shape: f32[2,32], index: 0, kind: input, shape index: {}]
  %s1 = inlined_call_operand.hbm [shape: f32[32,128], index: 1, kind: input, shape index: {}]
  %s2 = inlined_call_operand.vmem [shape: f32[1,128], index: 2, kind: input, shape index: {}]
  %s3 = inlined_call_operand.hbm [shape: f32[128,128], index: 3, kind: input, shape index: {}]
  %s4 = inlined_call_operand.vmem [shape: f32[1,128], index: 4, kind: input, shape index: {}]
  %s5 = inlined_call_operand.hbm [shape: f32[2,128], index: 5, kind: output, shape index: {}]
  %s6 = sld [smem:[#allocation0]]
  $region42: #{time_embeddings_forward.1} parent=0
    _
  %s8 = ssub.s32 1, %s6
  %s9 = scalar_select 0, %s8, %s6
  $region1: #{time_embeddings_forward.1} parent=0
    #allocation2 [shape = 'u8[1024]{0}', space=vmem, size = 0x400, scoped, tag = 'input window, operand 0, single buffered']
    #allocation3 [shape = 's32[1]{0}', space=sflag, size = 0x4, scoped, tag = 'scoped memory for time_embeddings_forward.1']
    #allocation4 [shape = 's32[1]{0}', space=sflag, size = 0x4, scoped, tag = 'scoped memory for time_embeddings_forward.1']
    #allocation5 [shape = 'u8[16384]{0}', space=vmem, size = 0x4000, scoped, tag = 'input window, operand 1, single buffered']
    #allocation6 [shape = 's32[1]{0}', space=sflag, size = 0x4, scoped, tag = 'scoped memory for time_embeddings_forward.1']
    #allocation7 [shape = 'u8[65536]{0}', space=vmem, size = 0x10000, scoped, tag = 'input window, operand 3, single buffered']
    #allocation8 [shape = 'u8[1024]{0}', space=vmem, size = 0x400, scoped, tag = 'output window, operand 0, single buffered']
    %10 = vsyncpa [#allocation3], 0
    %11 = vsyncpa [#allocation6], 0
    %12 = vsyncpa [#allocation4], 0
    // Predicated region
    $region2: #{time_embeddings_forward.1} parent=1 // pred_check
      _
    $region3: #{time_embeddings_forward.1} parent=1 // pred_check_branch
      %14 = sbr.rel (0) target = $region5
    $region4: #{time_embeddings_forward.1} parent=1 // pred_region
      %16 = vsyncadd [#allocation3], 0
      %s18 = sshll.u32 %s0, 4
      %s19 = int_to_ptr.hbm [resolvable:$true] %s18
      %s20 = sshll.u32 [#allocation2], 4
      %s21 = int_to_ptr.vmem [resolvable:$true] %s20
      %23 = dma.hbm_to_vmem [thread:$0]  %s19, 32, %s21, [#allocation3]
    $region5: #{time_embeddings_forward.1} parent=1 // pred_fallthru
      _
    // Predicated region
    $region6: #{time_embeddings_forward.1} parent=1 // pred_check
      _
    $region7: #{time_embeddings_forward.1} parent=1 // pred_check_branch
      %25 = sbr.rel (0) target = $region9
    $region8: #{time_embeddings_forward.1} parent=1 // pred_region
      %27 = vsyncadd [#allocation6], 0
      %s28 = sshll.u32 %s1, 4
      %s29 = int_to_ptr.hbm [resolvable:$true] %s28
      %s30 = sshll.u32 [#allocation5], 4
      %s31 = int_to_ptr.vmem [resolvable:$true] %s30
      %36 = dma.hbm_to_vmem [thread:$0]  %s29, 512, %s31, [#allocation6], 128, 128, 8
    $region9: #{time_embeddings_forward.1} parent=1 // pred_fallthru
      _
    // Predicated region
    $region10: #{time_embeddings_forward.1} parent=1 // pred_check
      _
    $region11: #{time_embeddings_forward.1} parent=1 // pred_check_branch
      %38 = sbr.rel (0) target = $region13
    $region12: #{time_embeddings_forward.1} parent=1 // pred_region
      _
    $region13: #{time_embeddings_forward.1} parent=1 // pred_fallthru
      _
    // Predicated region
    $region14: #{time_embeddings_forward.1} parent=1 // pred_check
      _
    $region15: #{time_embeddings_forward.1} parent=1 // pred_check_branch
      %40 = sbr.rel (0) target = $region17
    $region16: #{time_embeddings_forward.1} parent=1 // pred_region
      %42 = vsyncadd [#allocation6], 0
      %s43 = sshll.u32 %s3, 4
      %s44 = int_to_ptr.hbm [resolvable:$true] %s43
      %s45 = sshll.u32 [#allocation7], 4
      %s46 = int_to_ptr.vmem [resolvable:$true] %s45
      %51 = dma.hbm_to_vmem [thread:$0]  %s44, 2048, %s46, [#allocation6], 128, 128, 8
    $region17: #{time_embeddings_forward.1} parent=1 // pred_fallthru
      _
    // Predicated region
    $region18: #{time_embeddings_forward.1} parent=1 // pred_check
      _
    $region19: #{time_embeddings_forward.1} parent=1 // pred_check_branch
      %53 = sbr.rel (0) target = $region21
    $region20: #{time_embeddings_forward.1} parent=1 // pred_region
      _
    $region21: #{time_embeddings_forward.1} parent=1 // pred_fallthru
      _
    // Predicated region
    $region22: #{time_embeddings_forward.1} parent=1 // pred_check
      _
    $region23: #{time_embeddings_forward.1} parent=1 // pred_check_branch
      %55 = sbr.rel (0) target = $region25
    $region24: #{time_embeddings_forward.1} parent=1 // pred_region
      %57 = dma.done [#allocation3], 32
    $region25: #{time_embeddings_forward.1} parent=1 // pred_fallthru
      _
    // Predicated region
    $region26: #{time_embeddings_forward.1} parent=1 // pred_check
      _
    $region27: #{time_embeddings_forward.1} parent=1 // pred_check_branch
      %59 = sbr.rel (0) target = $region29
    $region28: #{time_embeddings_forward.1} parent=1 // pred_region
      %61 = dma.done [#allocation6], 512
    $region29: #{time_embeddings_forward.1} parent=1 // pred_fallthru
      _
    // Predicated region
    $region30: #{time_embeddings_forward.1} parent=1 // pred_check
      _
    $region31: #{time_embeddings_forward.1} parent=1 // pred_check_branch
      %63 = sbr.rel (0) target = $region33
    $region32: #{time_embeddings_forward.1} parent=1 // pred_region
      %65 = dma.done [#allocation6], 2048
    $region33: #{time_embeddings_forward.1} parent=1 // pred_fallthru
      _
    %v66 = vld [vmem:[#allocation2] sm:$0x3]
    %v67 = vld [vmem:[#allocation5] sm:$0xff]
    %v68 = vld [vmem:[#allocation5 + $0x8] sm:$0xff]
    %v69 = vld [vmem:[#allocation5 + $0x10] sm:$0xff]
    %v70 = vld [vmem:[#allocation5 + $0x18] sm:$0xff]
    %v71 = vld [vmem:[%s2] sm:$0x1]
    %v73 = vperm.slane %v71, 0
    %vm75 = vcmask 261120
    %v77 = vsel %vm75, %v66, 0
    %79 = vmatpush.msra.mxu0 0.0
    %80 = vmatpush.msra.mxu0 0.0
    %81 = vmatpush.msra.mxu0 0.0
    %82 = vmatpush.msra.mxu0 0.0
    %83 = vmatpush.msra.mxu0 0.0
    %84 = vmatpush.msra.mxu0 0.0
    %85 = vmatpush.msra.mxu0 0.0
    %86 = vmatpush.msra.mxu0 0.0
    %87 = vmatpush.msra.mxu0 0.0
    %88 = vmatpush.msra.mxu0 0.0
    %89 = vmatpush.msra.mxu0 0.0
    %90 = vmatpush.msra.mxu0 0.0
    %91 = vmatpush.msra.mxu0 %v70
    %92 = vmatpush.msra.mxu0 %v69
    %93 = vmatpush.msra.mxu0 %v68
    %94 = vmatpush.msra.mxu0 %v67
    %95 = vmatmul.f32.gmra.mxu0 %v77
    %v96 = vpop.f32.mrf.mxu0
    %v97 = vadd.f32 %v73, %v96
    %98 = vdwg.mxu0
    %v99 = vxor.u32 %v97, 2147483648
    %v100 = vmul.f32 %v99, 1.442695
    %v101 = vpow.pop %v100
    %v102 = vadd.f32 %v101, 1.0
    %v103 = vrcp.pop %v102
    %v104 = vmul.f32 %v102, %v103
    %v105 = vsub.f32 1.0, %v104
    %v106 = vmul.f32 %v103, %v105
    %v107 = vadd.f32 %v103, %v106
    %vm108 = vweird.f32 %v102
    %vm109 = vweird.f32 %v103
    %vm110 = vmor %vm108, %vm109
    %v111 = vsel %vm110, %v103, %v107
    %v112 = vand.u32 2147483647, %v102
    %vm113 = vcmp.eq.f32.partialorder %v112, 8.507059e+37
    %v114 = vand.u32 %v102, 2147483648
    %v115 = vor.u32 1.1754944e-38, %v114
    %v116 = vsel %vm113, %v115, %v111
    %v117 = vmul.f32 1.0, %v116
    %v118 = vmul.f32 %v97, %v117
    %v119 = vld [vmem:[#allocation7] sm:$0xff]
    %v120 = vld [vmem:[#allocation7 + $0x8] sm:$0xff]
    %v121 = vld [vmem:[#allocation7 + $0x10] sm:$0xff]
    %v122 = vld [vmem:[#allocation7 + $0x18] sm:$0xff]
    %v123 = vld [vmem:[#allocation7 + $0x20] sm:$0xff]
    %v124 = vld [vmem:[#allocation7 + $0x28] sm:$0xff]
    %v125 = vld [vmem:[#allocation7 + $0x30] sm:$0xff]
    %v126 = vld [vmem:[#allocation7 + $0x38] sm:$0xff]
    %v127 = vld [vmem:[#allocation7 + $0x40] sm:$0xff]
    %v128 = vld [vmem:[#allocation7 + $0x48] sm:$0xff]
    %v129 = vld [vmem:[#allocation7 + $0x50] sm:$0xff]
    %v130 = vld [vmem:[#allocation7 + $0x58] sm:$0xff]
    %v131 = vld [vmem:[#allocation7 + $0x60] sm:$0xff]
    %v132 = vld [vmem:[#allocation7 + $0x68] sm:$0xff]
    %v133 = vld [vmem:[#allocation7 + $0x70] sm:$0xff]
    %v134 = vld [vmem:[#allocation7 + $0x78] sm:$0xff]
    %v135 = vld [vmem:[%s4] sm:$0x1]
    %v137 = vperm.slane %v135, 0
    %139 = vmatpush.msra.mxu0 %v134
    %140 = vmatpush.msra.mxu0 %v133
    %141 = vmatpush.msra.mxu0 %v132
    %142 = vmatpush.msra.mxu0 %v131
    %143 = vmatpush.msra.mxu0 %v130
    %144 = vmatpush.msra.mxu0 %v129
    %145 = vmatpush.msra.mxu0 %v128
    %146 = vmatpush.msra.mxu0 %v127
    %147 = vmatpush.msra.mxu0 %v126
    %148 = vmatpush.msra.mxu0 %v125
    %149 = vmatpush.msra.mxu0 %v124
    %150 = vmatpush.msra.mxu0 %v123
    %151 = vmatpush.msra.mxu0 %v122
    %152 = vmatpush.msra.mxu0 %v121
    %153 = vmatpush.msra.mxu0 %v120
    %154 = vmatpush.msra.mxu0 %v119
    %155 = vmatmul.f32.gmra.mxu0 %v118
    %v156 = vpop.f32.mrf.mxu0
    %v157 = vadd.f32 %v137, %v156
    %158 = vdwg.mxu0
    %159 = vst [vmem:[#allocation8] sm:$0x3] %v157
    // Predicated region
    $region34: #{time_embeddings_forward.1} parent=1 // pred_check
      _
    $region35: #{time_embeddings_forward.1} parent=1 // pred_check_branch
      %161 = sbr.rel (0) target = $region37
    $region36: #{time_embeddings_forward.1} parent=1 // pred_region
      %163 = vsyncadd [#allocation4], 0
      %s165 = sshll.u32 [#allocation8], 4
      %s166 = int_to_ptr.vmem [resolvable:$true] %s165
      %s167 = sshll.u32 %s5, 4
      %s168 = int_to_ptr.hbm [resolvable:$true] %s167
      %170 = dma.vmem_to_hbm [thread:$0]  %s166, 32, %s168, [#allocation4]
    $region37: #{time_embeddings_forward.1} parent=1 // pred_fallthru
      _
    // Predicated region
    $region38: #{time_embeddings_forward.1} parent=1 // pred_check
      _
    $region39: #{time_embeddings_forward.1} parent=1 // pred_check_branch
      %172 = sbr.rel (0) target = $region41
    $region40: #{time_embeddings_forward.1} parent=1 // pred_region
      %174 = dma.done [#allocation4], 32
    $region41: #{time_embeddings_forward.1} parent=1 // pred_fallthru
      _
    %175 = vsyncpa [#allocation3], 1
    %176 = vsyncpa [#allocation6], 1
    %177 = vsyncpa [#allocation4], 1

</llo_original>
